<compile_context>
chip_gen: v7x
topology: tpu7x:2x2x1
jax: 0.10.0
libtpu: 0.0.40
codegen_flags: <defaults>
</compile_context>

<pallas_src>
import functools

import jax
import jax.numpy as jnp
from jax.experimental import pallas as pl
from jax.experimental.pallas import tpu as pltpu

EPS = 1e-5
_F32 = 4
TARGET_TILE_BYTES = 4 * 1024 * 1024   # ~4 MiB per (C, T) f32 tile saturates HBM


# ---------------------------------------------------------------------------
# Generation-aware sizing
# ---------------------------------------------------------------------------

_VMEM_CAP = None


def _vmem_capacity_bytes():
    """Physical VMEM per core; conservative 64 MiB fallback (v7x-safe)."""
    global _VMEM_CAP
    if _VMEM_CAP is None:
        cap = 64 * 1024 * 1024
        try:
            info = pltpu.get_tpu_info()
            cap = int(getattr(info, "vmem_capacity_bytes", cap) or cap)
        except Exception:
            pass
        _VMEM_CAP = cap
    return _VMEM_CAP


def _plan_tiles(C, HW, cap):
    """Pick lane-tile width T (multiple of 128) and padded HW.

    Budget: 2x input + 2x output double-buffered (C,T) f32 tiles plus the
    (C,C) weight must stay well under the per-generation VMEM capacity, and a
    single tile should be a few MiB so the ~0.35 us per-grid-step overhead is
    amortized against its DMA time.
    """
    per_col = 4 * C * _F32                                   # 2 in + 2 out bufs
    budget_cols = max(128, int(cap * 0.55 - C * C * _F32) // per_col)
    target_cols = max(128, TARGET_TILE_BYTES // (C * _F32))
    t_budget = max(128, (min(budget_cols, target_cols) // 128) * 128)

    hw128 = ((HW + 127) // 128) * 128
    if hw128 <= t_budget:                                    # single tile/sample
        return hw128, hw128
    if HW % 128 == 0:                                        # exact 128-aligned divisor
        t = t_budget
        while t >= 128:
            if HW % t == 0:
                return t, HW
            t -= 128
    t = t_budget                                             # pad to a multiple of T
    return t, ((HW + t - 1) // t) * t


# ---------------------------------------------------------------------------
# BlockSpec helpers.  Kernels always see x/out tiles of shape (C, T).
# ---------------------------------------------------------------------------

def _x_spec(C, T):
    return pl.BlockSpec((None, C, T), lambda n, t: (n, 0, t))


def _stat_spec(C):
    # Per-sample (C, 2) accumulator, resident across the "arbitrary" tile axis.
    return pl.BlockSpec((None, C, 2), lambda n, t: (n, 0, 0))


def _param_spec(shape):
    # Small parameters: constant index_map -> DMA'd once, kept resident.
    return pl.BlockSpec(shape, lambda *_: (0,) * len(shape))


def _sigmoid(y):
    # exp + approximate reciprocal both live on the EUP (free slots in a
    # mem-bound epilogue); clamp absorbs the ~1e-4 approx overshoot.
    return jnp.minimum(pl.reciprocal(1.0 + jnp.exp(-y), approx=True), 1.0)


# ---------------------------------------------------------------------------
# Pass 1: per-channel sum / sum-of-squares of x (zero padding is harmless).
# ---------------------------------------------------------------------------

def _stats_kernel(x_ref, stat_ref):
    @pl.when(pl.program_id(1) == 0)
    def _init():
        stat_ref[...] = jnp.zeros_like(stat_ref)

    x = x_ref[...].astype(jnp.float32)                        # (C, T)
    stat_ref[:, 0:1] += jnp.sum(x, axis=1, keepdims=True)
    stat_ref[:, 1:2] += jnp.sum(x * x, axis=1, keepdims=True)


def _stats_pass(x3, T, vmem_limit):
    N, C, HWp = x3.shape
    return pl.pallas_call(
        _stats_kernel,
        out_shape=jax.ShapeDtypeStruct((N, C, 2), jnp.float32),
        grid=(N, HWp // T),
        in_specs=[_x_spec(C, T)],
        out_specs=_stat_spec(C),
        compiler_params=pltpu.CompilerParams(
            dimension_semantics=("parallel", "arbitrary"),
            vmem_limit_bytes=vmem_limit),
    )(x3)


# ---------------------------------------------------------------------------
# Fused pass 2+3: compute/cache y1 + stats, then fold BN2 and apply from cache.
# Grid = (2*N, K): p < N is the compute/stats phase, p >= N the apply phase.
# x is DMA'd only in the compute phase (constant index map in the apply phase
# => no re-fetch); the output block index is constant during the compute phase
# => nothing is written back until the apply phase fills it.
# ---------------------------------------------------------------------------

def _fused_pass(x3, a1, c1, gamma, beta, w_mm, b, *, T, K, N, HW, pad,
                inv_count, out_dtype, vmem_limit):
    _, C, HWp = x3.shape
    NK = N * K

    def kernel(x_ref, a1_ref, c1_ref, g_ref, bt_ref, w_ref, b_ref, o_ref,
               y1_ref, ssum_ref, ssq_ref, a2_ref, c2_ref):
        p = pl.program_id(0)
        t = pl.program_id(1)

        @pl.when(jnp.logical_and(p == 0, t == 0))
        def _init():
            ssum_ref[...] = jnp.zeros_like(ssum_ref)
            ssq_ref[...] = jnp.zeros_like(ssq_ref)

        @pl.when(p < N)
        def _compute():
            x = x_ref[...].astype(jnp.float32)                # (C, T)
            h1 = jnp.maximum(x * a1_ref[...] + c1_ref[...], 0.0)
            y1 = jnp.dot(w_ref[...], h1.astype(w_ref.dtype),
                         preferred_element_type=jnp.float32) + b_ref[...]
            y1_ref[p * K + t] = y1                            # cache for the apply phase
            if pad:                                           # mask padded columns out of stats
                col = t * T + jax.lax.broadcasted_iota(jnp.int32, (1, T), 1)
                y1s = jnp.where(col < HW, y1, 0.0)
            else:
                y1s = y1
            ssum_ref[...] += jnp.sum(y1s, axis=1, keepdims=True)
            ssq_ref[...] += jnp.sum(y1s * y1s, axis=1, keepdims=True)

        @pl.when(jnp.logical_and(p == N, t == 0))
        def _fold_bn2():
            mean = ssum_ref[...] * inv_count
            var = ssq_ref[...] * inv_count - mean * mean      # biased batch variance
            a2 = g_ref[...] * jax.lax.rsqrt(var + EPS)
            a2_ref[...] = a2
            c2_ref[...] = bt_ref[...] - mean * a2

        @pl.when(p >= N)
        def _apply():
            y1 = y1_ref[(p - N) * K + t]
            h2 = jnp.maximum(y1 * a2_ref[...] + c2_ref[...], 0.0)
            y2 = jnp.dot(w_ref[...], h2.astype(w_ref.dtype),
                         preferred_element_type=jnp.float32) + b_ref[...]
            o_ref[...] = _sigmoid(y2).astype(o_ref.dtype)

    x_spec = pl.BlockSpec(
        (None, C, T),
        lambda p, t: (jnp.where(p < N, p, N - 1), 0, jnp.where(p < N, t, K - 1)))
    o_spec = pl.BlockSpec(
        (None, C, T),
        lambda p, t: (jnp.where(p < N, 0, p - N), 0, jnp.where(p < N, 0, t)))

    return pl.pallas_call(
        kernel,
        out_shape=jax.ShapeDtypeStruct((N, C, HWp), out_dtype),
        grid=(2 * N, K),
        in_specs=[x_spec, _param_spec((C, 1)), _param_spec((C, 1)),
                  _param_spec((C, 1)), _param_spec((C, 1)),
                  _param_spec((C, C)), _param_spec((C, 1))],
        out_specs=o_spec,
        scratch_shapes=[pltpu.VMEM((NK, C, T), jnp.float32),   # y1 cache
                        pltpu.VMEM((C, 1), jnp.float32),       # sum(y1)
                        pltpu.VMEM((C, 1), jnp.float32),       # sum(y1^2)
                        pltpu.VMEM((C, 1), jnp.float32),       # a2
                        pltpu.VMEM((C, 1), jnp.float32)],      # c2
        compiler_params=pltpu.CompilerParams(
            dimension_semantics=("arbitrary", "arbitrary"),
            vmem_limit_bytes=vmem_limit),
    )(x3, a1, c1, gamma, beta, w_mm, b)


# ---------------------------------------------------------------------------
# Unfused fallback (y1 cache does not fit VMEM): pass 2 recomputes y1 for its
# statistics; pass 3 recomputes y1 again with BN2 pre-folded into the weights.
# ---------------------------------------------------------------------------

def _make_y1_stats_kernel(T, HW, pad):
    def kernel(x_ref, a1_ref, c1_ref, w_ref, b_ref, stat_ref):
        @pl.when(pl.program_id(1) == 0)
        def _init():
            stat_ref[...] = jnp.zeros_like(stat_ref)

        x = x_ref[...].astype(jnp.float32)
        h1 = jnp.maximum(x * a1_ref[...] + c1_ref[...], 0.0)
        y1 = jnp.dot(w_ref[...], h1.astype(w_ref.dtype),
                     preferred_element_type=jnp.float32) + b_ref[...]
        if pad:
            col = pl.program_id(1) * T + jax.lax.broadcasted_iota(jnp.int32, (1, T), 1)
            y1 = jnp.where(col < HW, y1, 0.0)
        stat_ref[:, 0:1] += jnp.sum(y1, axis=1, keepdims=True)
        stat_ref[:, 1:2] += jnp.sum(y1 * y1, axis=1, keepdims=True)
    return kernel


def _y1_stats_pass(x3, a1, c1, w_mm, b, T, HW, pad, vmem_limit):
    N, C, HWp = x3.shape
    return pl.pallas_call(
        _make_y1_stats_kernel(T, HW, pad),
        out_shape=jax.ShapeDtypeStruct((N, C, 2), jnp.float32),
        grid=(N, HWp // T),
        in_specs=[_x_spec(C, T), _param_spec((C, 1)), _param_spec((C, 1)),
                  _param_spec((C, C)), _param_spec((C, 1))],
        out_specs=_stat_spec(C),
        compiler_params=pltpu.CompilerParams(
            dimension_semantics=("parallel", "arbitrary"),
            vmem_limit_bytes=vmem_limit),
    )(x3, a1, c1, w_mm, b)


def _final_kernel(x_ref, a1_ref, c1_ref, wa_ref, ba_ref, w_ref, b_ref, o_ref):
    x = x_ref[...].astype(jnp.float32)
    h1 = jnp.maximum(x * a1_ref[...] + c1_ref[...], 0.0)
    # BN2's affine is folded into wa/ba (wrapper side): h2 = relu(a2*y1 + c2)
    # == relu((a2 o w) @ h1 + (a2*b + c2)) -> saves one (C,T) mul+add per tile.
    h2 = jnp.maximum(jnp.dot(wa_ref[...], h1.astype(wa_ref.dtype),
                             preferred_element_type=jnp.float32) + ba_ref[...], 0.0)
    y2 = jnp.dot(w_ref[...], h2.astype(w_ref.dtype),
                 preferred_element_type=jnp.float32) + b_ref[...]
    o_ref[...] = _sigmoid(y2).astype(o_ref.dtype)


def _final_pass(x3, a1, c1, wa, ba, w_mm, b, T, out_dtype, vmem_limit):
    N, C, HWp = x3.shape
    return pl.pallas_call(
        _final_kernel,
        out_shape=jax.ShapeDtypeStruct((N, C, HWp), out_dtype),
        grid=(N, HWp // T),
        in_specs=[_x_spec(C, T), _param_spec((C, 1)), _param_spec((C, 1)),
                  _param_spec((C, C)), _param_spec((C, 1)),
                  _param_spec((C, C)), _param_spec((C, 1))],
        out_specs=_x_spec(C, T),
        compiler_params=pltpu.CompilerParams(
            dimension_semantics=("parallel", "parallel"),
            vmem_limit_bytes=vmem_limit),
    )(x3, a1, c1, wa, ba, w_mm, b)


# ---------------------------------------------------------------------------
# Wrapper
# ---------------------------------------------------------------------------

def _fold_bn(sums, gamma, beta, count):
    """(C, 2) streaming sums -> per-channel BN scale/shift, (C,1) each."""
    mean = sums[:, 0:1] / count
    var = sums[:, 1:2] / count - mean * mean                  # biased batch variance
    a = gamma * jax.lax.rsqrt(var + EPS)
    c = beta - mean * a
    return a, c


@functools.partial(jax.jit, static_argnames=("force_unfused",))
def mask_branchout(x_nchw, gamma, beta, conv_w, conv_b, force_unfused=False):
    """x_nchw: (N, C, H, W).  Returns (N, C, H, W) in the input dtype."""
    N, C, H, W = x_nchw.shape
    HW = H * W
    cap = _vmem_capacity_bytes()
    T, HW_pad = _plan_tiles(C, HW, cap)
    K = HW_pad // T
    pad = HW_pad - HW
    vmem_limit = int(cap * 0.85)

    out_dtype = x_nchw.dtype                                  # keep HBM I/O narrow if bf16
    mm_dtype = jnp.bfloat16 if C >= 128 else jnp.float32      # MXU-native path at large C

    x3 = x_nchw.reshape(N, C, HW)                             # free reshape, no transpose/upcast
    if pad:
        x3 = jnp.pad(x3, ((0, 0), (0, 0), (0, pad)))

    gamma32 = gamma.astype(jnp.float32).reshape(C, 1)
    beta32 = beta.astype(jnp.float32).reshape(C, 1)
    w32 = conv_w.reshape(C, C).astype(jnp.float32)            # (C_out, C_in)
    w_mm = w32.astype(mm_dtype)
    b = conv_b.astype(jnp.float32).reshape(C, 1)
    count = float(N * HW)                                     # padded columns excluded

    # pass 1: BN1 statistics of x (zero pads contribute nothing)
    a1, c1 = _fold_bn(_stats_pass(x3, T, vmem_limit).sum(axis=0), gamma32, beta32, count)

    # fused pass 2+3 if the full-batch y1 cache fits comfortably in VMEM
    y1_cache_bytes = N * K * C * T * _F32
    est_fused = y1_cache_bytes + 4 * C * T * _F32 + C * C * _F32
    use_fused = (not force_unfused
                 and y1_cache_bytes <= int(cap * 0.4)
                 and est_fused <= int(cap * 0.6))

    if use_fused:
        out3 = _fused_pass(x3, a1, c1, gamma32, beta32, w_mm, b,
                           T=T, K=K, N=N, HW=HW, pad=pad,
                           inv_count=1.0 / count, out_dtype=out_dtype,
                           vmem_limit=vmem_limit)
    else:
        sums2 = _y1_stats_pass(x3, a1, c1, w_mm, b, T, HW, pad, vmem_limit).sum(axis=0)
        a2, c2 = _fold_bn(sums2, gamma32, beta32, count)
        wa = (a2 * w32).astype(mm_dtype)                      # fold BN2 scale into conv rows
        ba = a2 * b + c2
        out3 = _final_pass(x3, a1, c1, wa, ba, w_mm, b, T, out_dtype, vmem_limit)

    if pad:
        out3 = out3[:, :, :HW]
    return out3.reshape(N, C, H, W)


# ---------------------------------------------------------------------------
# Pure-JAX reference of the PyTorch forward (for the sanity check).
# ---------------------------------------------------------------------------

def _reference(x, gamma, beta, conv_w, conv_b):
    C = x.shape[1]
    w = conv_w.reshape(C, C)
    g = gamma.reshape(1, C, 1, 1)
    bt = beta.reshape(1, C, 1, 1)
    bb = conv_b.reshape(1, C, 1, 1)

    def bn_relu(v):
        mean = v.mean(axis=(0, 2, 3), keepdims=True)
        var = ((v - mean) ** 2).mean(axis=(0, 2, 3), keepdims=True)
        return jnp.maximum((v - mean) * jax.lax.rsqrt(var + EPS) * g + bt, 0.0)

    def conv1x1(v):
        return (v[:, None] * w[None, :, :, None, None]).sum(axis=2) + bb

    y = conv1x1(bn_relu(x))
    y = conv1x1(bn_relu(y))
    return 1.0 / (1.0 + jnp.exp(-y))


if __name__ == "__main__":
    key = jax.random.PRNGKey(0)
    kx, kg, kb, kw, kc, kx2 = jax.random.split(key, 6)

    N, C, H, W = 2, 4, 16, 16
    x = jax.random.normal(kx, (N, C, H, W), dtype=jnp.float32)
    gamma = 1.0 + 0.1 * jax.random.normal(kg, (C,), dtype=jnp.float32)
    beta = 0.1 * jax.random.normal(kb, (C,), dtype=jnp.float32)
    conv_w = jax.random.normal(kw, (C, C, 1, 1), dtype=jnp.float32) / jnp.sqrt(1.0 * C)
    conv_b = 0.1 * jax.random.normal(kc, (C,), dtype=jnp.float32)

    ref = _reference(x, gamma, beta, conv_w, conv_b)
    for force_unfused in (False, True):
        out = jax.block_until_ready(
            mask_branchout(x, gamma, beta, conv_w, conv_b, force_unfused=force_unfused))
        assert out.shape == (N, C, H, W)
        assert bool(jnp.all(jnp.isfinite(out)))
        assert bool(jnp.all((out >= 0.0) & (out <= 1.0)))
        err = float(jnp.max(jnp.abs(out - ref)))
        assert err < 1e-2, f"force_unfused={force_unfused}: max abs error {err}"

    # Spatial size with no 128-aligned divisor -> exercises the pad + mask path.
    x2 = jax.random.normal(kx2, (2, C, 10, 10), dtype=jnp.float32)
    ref2 = _reference(x2, gamma, beta, conv_w, conv_b)
    for force_unfused in (False, True):
        out2 = jax.block_until_ready(
            mask_branchout(x2, gamma, beta, conv_w, conv_b, force_unfused=force_unfused))
        err2 = float(jnp.max(jnp.abs(out2 - ref2)))
        assert err2 < 1e-2, f"pad path force_unfused={force_unfused}: max abs error {err2}"

    print("KERNEL_OK")
</pallas_src>

<mosaic_0001>
module attributes {stable_mosaic.version = 11 : i64} {
  func.func @_stats_kernel(%arg0: i32, %arg1: i32, %arg2: memref<1x4x256xf32, #tpu.memory_space<vmem>>, %arg3: memref<1x4x2xf32, #tpu.memory_space<vmem>>) attributes {dimension_semantics = [#tpu.dimension_semantics<parallel>, #tpu.dimension_semantics<arbitrary>], iteration_bounds = array<i64: 2, 1>, scalar_prefetch = 0 : i64, scratch_operands = 0 : i64, tpu.core_type = #tpu.core_type<tc>, window_params = [{transform_indices = @transform_0, window_bounds = array<i64: 1, 4, 256>}, {transform_indices = @transform_1, window_bounds = array<i64: 1, 4, 2>}]} {
    %c0_i32 = arith.constant 0 : i32
    %0 = arith.cmpi eq, %arg1, %c0_i32 : i32
    %1 = arith.extui %0 : i1 to i32
    %c0_i32_0 = arith.constant 0 : i32
    %2 = arith.cmpi ne, %1, %c0_i32_0 : i32
    scf.if %2 {
      %cst_15 = arith.constant 0.000000e+00 : f32
      %22 = vector.broadcast %cst_15 : f32 to vector<4x2xf32>
      %c0_16 = arith.constant 0 : index
      %c0_17 = arith.constant 0 : index
      %c0_18 = arith.constant 0 : index
      %23 = vector.load %arg3[%c0_16, %c0_17, %c0_18] : memref<1x4x2xf32, #tpu.memory_space<vmem>>, vector<1x4x2xf32>
      %24 = vector.shape_cast %23 : vector<1x4x2xf32> to vector<4x2xf32>
      %25 = vector.shape_cast %22 : vector<4x2xf32> to vector<1x4x2xf32>
      tpu.vector_store %arg3[%c0_16, %c0_17, %c0_18], %25 {strides = array<i32>} : memref<1x4x2xf32, #tpu.memory_space<vmem>>, vector<1x4x2xf32>,
    } else {
    }
    %c0 = arith.constant 0 : index
    %c0_1 = arith.constant 0 : index
    %c0_2 = arith.constant 0 : index
    %3 = vector.load %arg2[%c0, %c0_1, %c0_2] : memref<1x4x256xf32, #tpu.memory_space<vmem>>, vector<1x4x256xf32>
    %4 = vector.shape_cast %3 : vector<1x4x256xf32> to vector<4x256xf32>
    %c0_3 = arith.constant 0 : index
    %c0_4 = arith.constant 0 : index
    %c0_5 = arith.constant 0 : index
    %5 = vector.load %arg3[%c0_3, %c0_4, %c0_5] : memref<1x4x2xf32, #tpu.memory_space<vmem>>, vector<1x4x1xf32>
    %6 = vector.shape_cast %5 : vector<1x4x1xf32> to vector<4x1xf32>
    %cst = arith.constant dense<0.000000e+00> : vector<4xf32>
    %7 = vector.multi_reduction <add>, %4, %cst [1] : vector<4x256xf32> to vector<4xf32>
    %8 = vector.shape_cast %7 : vector<4xf32> to vector<4x1xf32>
    %9 = arith.addf %6, %8 : vector<4x1xf32>
    %c0_6 = arith.constant 0 : index
    %c0_7 = arith.constant 0 : index
    %c0_8 = arith.constant 0 : index
    %10 = vector.load %arg3[%c0_6, %c0_7, %c0_8] : memref<1x4x2xf32, #tpu.memory_space<vmem>>, vector<1x4x1xf32>
    %11 = vector.shape_cast %10 : vector<1x4x1xf32> to vector<4x1xf32>
    %12 = vector.shape_cast %9 : vector<4x1xf32> to vector<1x4x1xf32>
    tpu.vector_store %arg3[%c0_6, %c0_7, %c0_8], %12 {strides = array<i32>} : memref<1x4x2xf32, #tpu.memory_space<vmem>>, vector<1x4x1xf32>,
    %c0_9 = arith.constant 0 : index
    %c0_10 = arith.constant 0 : index
    %c1 = arith.constant 1 : index
    %13 = vector.load %arg3[%c0_9, %c0_10, %c1] : memref<1x4x2xf32, #tpu.memory_space<vmem>>, vector<1x4x1xf32>
    %14 = vector.shape_cast %13 : vector<1x4x1xf32> to vector<4x1xf32>
    %15 = arith.mulf %4, %4 : vector<4x256xf32>
    %cst_11 = arith.constant dense<0.000000e+00> : vector<4xf32>
    %16 = vector.multi_reduction <add>, %15, %cst_11 [1] : vector<4x256xf32> to vector<4xf32>
    %17 = vector.shape_cast %16 : vector<4xf32> to vector<4x1xf32>
    %18 = arith.addf %14, %17 : vector<4x1xf32>
    %c0_12 = arith.constant 0 : index
    %c0_13 = arith.constant 0 : index
    %c1_14 = arith.constant 1 : index
    %19 = vector.load %arg3[%c0_12, %c0_13, %c1_14] : memref<1x4x2xf32, #tpu.memory_space<vmem>>, vector<1x4x1xf32>
    %20 = vector.shape_cast %19 : vector<1x4x1xf32> to vector<4x1xf32>
    %21 = vector.shape_cast %18 : vector<4x1xf32> to vector<1x4x1xf32>
    tpu.vector_store %arg3[%c0_12, %c0_13, %c1_14], %21 {strides = array<i32>} : memref<1x4x2xf32, #tpu.memory_space<vmem>>, vector<1x4x1xf32>,
    return
  }
  func.func @transform_0(%arg0: i32, %arg1: i32) -> (i32, i32, i32) {
    %c0_i32 = arith.constant 0 : i32
    %c0_i32_0 = arith.constant 0 : i32
    return %arg0, %c0_i32, %arg1 : i32, i32, i32
  }
  func.func @transform_1(%arg0: i32, %arg1: i32) -> (i32, i32, i32) {
    %c0_i32 = arith.constant 0 : i32
    %c0_i32_0 = arith.constant 0 : i32
    %c0_i32_1 = arith.constant 0 : i32
    return %arg0, %c0_i32, %c0_i32_0 : i32, i32, i32
  }
}

module attributes {stable_mosaic.version = 11 : i64} {
  func.func @kernel(%arg0: i32, %arg1: i32, %arg2: memref<1x4x256xf32, #tpu.memory_space<vmem>>, %arg3: memref<4x1xf32, #tpu.memory_space<vmem>>, %arg4: memref<4x1xf32, #tpu.memory_space<vmem>>, %arg5: memref<4x1xf32, #tpu.memory_space<vmem>>, %arg6: memref<4x1xf32, #tpu.memory_space<vmem>>, %arg7: memref<4x4xf32, #tpu.memory_space<vmem>>, %arg8: memref<4x1xf32, #tpu.memory_space<vmem>>, %arg9: memref<1x4x256xf32, #tpu.memory_space<vmem>>, %arg10: memref<2x4x256xf32, #tpu.memory_space<vmem>>, %arg11: memref<4x1xf32, #tpu.memory_space<vmem>>, %arg12: memref<4x1xf32, #tpu.memory_space<vmem>>, %arg13: memref<4x1xf32, #tpu.memory_space<vmem>>, %arg14: memref<4x1xf32, #tpu.memory_space<vmem>>) attributes {dimension_semantics = [#tpu.dimension_semantics<arbitrary>, #tpu.dimension_semantics<arbitrary>], iteration_bounds = array<i64: 4, 1>, scalar_prefetch = 0 : i64, scratch_operands = 5 : i64, tpu.core_type = #tpu.core_type<tc>, window_params = [{transform_indices = @transform_0, window_bounds = array<i64: 1, 4, 256>}, {pipeline_mode = #tpu.pipeline_mode<synchronous>, transform_indices = @transform_1, window_bounds = array<i64: 4, 1>}, {pipeline_mode = #tpu.pipeline_mode<synchronous>, transform_indices = @transform_2, window_bounds = array<i64: 4, 1>}, {pipeline_mode = #tpu.pipeline_mode<synchronous>, transform_indices = @transform_3, window_bounds = array<i64: 4, 1>}, {pipeline_mode = #tpu.pipeline_mode<synchronous>, transform_indices = @transform_4, window_bounds = array<i64: 4, 1>}, {pipeline_mode = #tpu.pipeline_mode<synchronous>, transform_indices = @transform_5, window_bounds = array<i64: 4, 4>}, {pipeline_mode = #tpu.pipeline_mode<synchronous>, transform_indices = @transform_6, window_bounds = array<i64: 4, 1>}, {transform_indices = @transform_7, window_bounds = array<i64: 1, 4, 256>}]} {
    %c0_i32 = arith.constant 0 : i32
    %0 = arith.cmpi eq, %arg0, %c0_i32 : i32
    %c0_i32_0 = arith.constant 0 : i32
    %1 = arith.cmpi eq, %arg1, %c0_i32_0 : i32
    %2 = arith.andi %0, %1 : i1
    %3 = arith.extui %2 : i1 to i32
    %c0_i32_1 = arith.constant 0 : i32
    %4 = arith.cmpi ne, %3, %c0_i32_1 : i32
    scf.if %4 {
      %cst = arith.constant 0.000000e+00 : f32
      %16 = vector.broadcast %cst : f32 to vector<4x1xf32>
      %c0 = arith.constant 0 : index
      %c0_8 = arith.constant 0 : index
      %17 = vector.load %arg11[%c0, %c0_8] : memref<4x1xf32, #tpu.memory_space<vmem>>, vector<4x1xf32>
      tpu.vector_store %arg11[%c0, %c0_8], %16 {strides = array<i32>} : memref<4x1xf32, #tpu.memory_space<vmem>>, vector<4x1xf32>,
      %cst_9 = arith.constant 0.000000e+00 : f32
      %18 = vector.broadcast %cst_9 : f32 to vector<4x1xf32>
      %c0_10 = arith.constant 0 : index
      %c0_11 = arith.constant 0 : index
      %19 = vector.load %arg12[%c0_10, %c0_11] : memref<4x1xf32, #tpu.memory_space<vmem>>, vector<4x1xf32>
      tpu.vector_store %arg12[%c0_10, %c0_11], %18 {strides = array<i32>} : memref<4x1xf32, #tpu.memory_space<vmem>>, vector<4x1xf32>,
    } else {
    }
    %c2_i32 = arith.constant 2 : i32
    %5 = arith.cmpi slt, %arg0, %c2_i32 : i32
    %6 = arith.extui %5 : i1 to i32
    %c0_i32_2 = arith.constant 0 : i32
    %7 = arith.cmpi ne, %6, %c0_i32_2 : i32
    scf.if %7 {
      %c0 = arith.constant 0 : index
      %c0_8 = arith.constant 0 : index
      %c0_9 = arith.constant 0 : index
      %16 = vector.load %arg2[%c0, %c0_8, %c0_9] : memref<1x4x256xf32, #tpu.memory_space<vmem>>, vector<1x4x256xf32>
      %17 = vector.shape_cast %16 : vector<1x4x256xf32> to vector<4x256xf32>
      %c0_10 = arith.constant 0 : index
      %c0_11 = arith.constant 0 : index
      %18 = vector.load %arg3[%c0_10, %c0_11] : memref<4x1xf32, #tpu.memory_space<vmem>>, vector<4x1xf32>
      %19 = vector.broadcast %18 : vector<4x1xf32> to vector<4x256xf32>
      %20 = arith.mulf %17, %19 : vector<4x256xf32>
      %c0_12 = arith.constant 0 : index
      %c0_13 = arith.constant 0 : index
      %21 = vector.load %arg4[%c0_12, %c0_13] : memref<4x1xf32, #tpu.memory_space<vmem>>, vector<4x1xf32>
      %22 = vector.broadcast %21 : vector<4x1xf32> to vector<4x256xf32>
      %23 = arith.addf %20, %22 : vector<4x256xf32>
      %cst = arith.constant 0.000000e+00 : f32
      %24 = vector.broadcast %cst : f32 to vector<4x256xf32>
      %25 = arith.maximumf %23, %24 : vector<4x256xf32>
      %c0_14 = arith.constant 0 : index
      %c0_15 = arith.constant 0 : index
      %26 = vector.load %arg7[%c0_14, %c0_15] : memref<4x4xf32, #tpu.memory_space<vmem>>, vector<4x4xf32>
      %cst_16 = arith.constant dense<0.000000e+00> : vector<4x256xf32>
      %27 = tpu.matmul %26, %25, %cst_16 {dimension_numbers = #tpu.dot_dimension_numbers<[1], [0], [0], [1], [0, 0, 1, 1], [], []>} : vector<4x4xf32>, vector<4x256xf32>, vector<4x256xf32> -> vector<4x256xf32>
      %c0_17 = arith.constant 0 : index
      %c0_18 = arith.constant 0 : index
      %28 = vector.load %arg8[%c0_17, %c0_18] : memref<4x1xf32, #tpu.memory_space<vmem>>, vector<4x1xf32>
      %29 = vector.broadcast %28 : vector<4x1xf32> to vector<4x256xf32>
      %30 = arith.addf %27, %29 : vector<4x256xf32>
      %c1_i32 = arith.constant 1 : i32
      %31 = arith.muli %arg0, %c1_i32 : i32
      %32 = arith.addi %31, %arg1 : i32
      %33 = arith.index_cast %32 : i32 to index
      %c0_19 = arith.constant 0 : index
      %c0_20 = arith.constant 0 : index
      %34 = vector.load %arg10[%33, %c0_19, %c0_20] : memref<2x4x256xf32, #tpu.memory_space<vmem>>, vector<1x4x256xf32>
      %35 = vector.shape_cast %34 : vector<1x4x256xf32> to vector<4x256xf32>
      %36 = vector.shape_cast %30 : vector<4x256xf32> to vector<1x4x256xf32>
      tpu.vector_store %arg10[%33, %c0_19, %c0_20], %36 {strides = array<i32>} : memref<2x4x256xf32, #tpu.memory_space<vmem>>, vector<1x4x256xf32>,
      %c0_21 = arith.constant 0 : index
      %c0_22 = arith.constant 0 : index
      %37 = vector.load %arg11[%c0_21, %c0_22] : memref<4x1xf32, #tpu.memory_space<vmem>>, vector<4x1xf32>
      %cst_23 = arith.constant dense<0.000000e+00> : vector<4xf32>
      %38 = vector.multi_reduction <add>, %30, %cst_23 [1] : vector<4x256xf32> to vector<4xf32>
      %39 = vector.shape_cast %38 : vector<4xf32> to vector<4x1xf32>
      %40 = arith.addf %37, %39 : vector<4x1xf32>
      %c0_24 = arith.constant 0 : index
      %c0_25 = arith.constant 0 : index
      %41 = vector.load %arg11[%c0_24, %c0_25] : memref<4x1xf32, #tpu.memory_space<vmem>>, vector<4x1xf32>
      tpu.vector_store %arg11[%c0_24, %c0_25], %40 {strides = array<i32>} : memref<4x1xf32, #tpu.memory_space<vmem>>, vector<4x1xf32>,
      %c0_26 = arith.constant 0 : index
      %c0_27 = arith.constant 0 : index
      %42 = vector.load %arg12[%c0_26, %c0_27] : memref<4x1xf32, #tpu.memory_space<vmem>>, vector<4x1xf32>
      %43 = arith.mulf %30, %30 : vector<4x256xf32>
      %cst_28 = arith.constant dense<0.000000e+00> : vector<4xf32>
      %44 = vector.multi_reduction <add>, %43, %cst_28 [1] : vector<4x256xf32> to vector<4xf32>
      %45 = vector.shape_cast %44 : vector<4xf32> to vector<4x1xf32>
      %46 = arith.addf %42, %45 : vector<4x1xf32>
      %c0_29 = arith.constant 0 : index
      %c0_30 = arith.constant 0 : index
      %47 = vector.load %arg12[%c0_29, %c0_30] : memref<4x1xf32, #tpu.memory_space<vmem>>, vector<4x1xf32>
      tpu.vector_store %arg12[%c0_29, %c0_30], %46 {strides = array<i32>} : memref<4x1xf32, #tpu.memory_space<vmem>>, vector<4x1xf32>,
    } else {
    }
    %c2_i32_3 = arith.constant 2 : i32
    %8 = arith.cmpi eq, %arg0, %c2_i32_3 : i32
    %c0_i32_4 = arith.constant 0 : i32
    %9 = arith.cmpi eq, %arg1, %c0_i32_4 : i32
    %10 = arith.andi %8, %9 : i1
    %11 = arith.extui %10 : i1 to i32
    %c0_i32_5 = arith.constant 0 : i32
    %12 = arith.cmpi ne, %11, %c0_i32_5 : i32
    scf.if %12 {
      %c0 = arith.constant 0 : index
      %c0_8 = arith.constant 0 : index
      %16 = vector.load %arg11[%c0, %c0_8] : memref<4x1xf32, #tpu.memory_space<vmem>>, vector<4x1xf32>
      %cst = arith.constant 0.001953125 : f32
      %17 = vector.broadcast %cst : f32 to vector<4x1xf32>
      %18 = arith.mulf %16, %17 : vector<4x1xf32>
      %c0_9 = arith.constant 0 : index
      %c0_10 = arith.constant 0 : index
      %19 = vector.load %arg12[%c0_9, %c0_10] : memref<4x1xf32, #tpu.memory_space<vmem>>, vector<4x1xf32>
      %cst_11 = arith.constant 0.001953125 : f32
      %20 = vector.broadcast %cst_11 : f32 to vector<4x1xf32>
      %21 = arith.mulf %19, %20 : vector<4x1xf32>
      %22 = arith.mulf %18, %18 : vector<4x1xf32>
      %23 = arith.subf %21, %22 : vector<4x1xf32>
      %c0_12 = arith.constant 0 : index
      %c0_13 = arith.constant 0 : index
      %24 = vector.load %arg5[%c0_12, %c0_13] : memref<4x1xf32, #tpu.memory_space<vmem>>, vector<4x1xf32>
      %cst_14 = arith.constant 9.99999974E-6 : f32
      %25 = vector.broadcast %cst_14 : f32 to vector<4x1xf32>
      %26 = arith.addf %23, %25 : vector<4x1xf32>
      %27 = math.rsqrt %26 : vector<4x1xf32>
      %28 = arith.mulf %24, %27 : vector<4x1xf32>
      %c0_15 = arith.constant 0 : index
      %c0_16 = arith.constant 0 : index
      %29 = vector.load %arg13[%c0_15, %c0_16] : memref<4x1xf32, #tpu.memory_space<vmem>>, vector<4x1xf32>
      tpu.vector_store %arg13[%c0_15, %c0_16], %28 {strides = array<i32>} : memref<4x1xf32, #tpu.memory_space<vmem>>, vector<4x1xf32>,
      %c0_17 = arith.constant 0 : index
      %c0_18 = arith.constant 0 : index
      %30 = vector.load %arg6[%c0_17, %c0_18] : memref<4x1xf32, #tpu.memory_space<vmem>>, vector<4x1xf32>
      %31 = arith.mulf %18, %28 : vector<4x1xf32>
      %32 = arith.subf %30, %31 : vector<4x1xf32>
      %c0_19 = arith.constant 0 : index
      %c0_20 = arith.constant 0 : index
      %33 = vector.load %arg14[%c0_19, %c0_20] : memref<4x1xf32, #tpu.memory_space<vmem>>, vector<4x1xf32>
      tpu.vector_store %arg14[%c0_19, %c0_20], %32 {strides = array<i32>} : memref<4x1xf32, #tpu.memory_space<vmem>>, vector<4x1xf32>,
    } else {
    }
    %c2_i32_6 = arith.constant 2 : i32
    %13 = arith.cmpi sge, %arg0, %c2_i32_6 : i32
    %14 = arith.extui %13 : i1 to i32
    %c0_i32_7 = arith.constant 0 : i32
    %15 = arith.cmpi ne, %14, %c0_i32_7 : i32
    scf.if %15 {
      %c2_i32_8 = arith.constant 2 : i32
      %16 = arith.subi %arg0, %c2_i32_8 : i32
      %c1_i32 = arith.constant 1 : i32
      %17 = arith.muli %16, %c1_i32 : i32
      %18 = arith.addi %17, %arg1 : i32
      %19 = arith.index_cast %18 : i32 to index
      %c0 = arith.constant 0 : index
      %c0_9 = arith.constant 0 : index
      %20 = vector.load %arg10[%19, %c0, %c0_9] : memref<2x4x256xf32, #tpu.memory_space<vmem>>, vector<1x4x256xf32>
      %21 = vector.shape_cast %20 : vector<1x4x256xf32> to vector<4x256xf32>
      %c0_10 = arith.constant 0 : index
      %c0_11 = arith.constant 0 : index
      %22 = vector.load %arg13[%c0_10, %c0_11] : memref<4x1xf32, #tpu.memory_space<vmem>>, vector<4x1xf32>
      %23 = vector.broadcast %22 : vector<4x1xf32> to vector<4x256xf32>
      %24 = arith.mulf %21, %23 : vector<4x256xf32>
      %c0_12 = arith.constant 0 : index
      %c0_13 = arith.constant 0 : index
      %25 = vector.load %arg14[%c0_12, %c0_13] : memref<4x1xf32, #tpu.memory_space<vmem>>, vector<4x1xf32>
      %26 = vector.broadcast %25 : vector<4x1xf32> to vector<4x256xf32>
      %27 = arith.addf %24, %26 : vector<4x256xf32>
      %cst = arith.constant 0.000000e+00 : f32
      %28 = vector.broadcast %cst : f32 to vector<4x256xf32>
      %29 = arith.maximumf %27, %28 : vector<4x256xf32>
      %c0_14 = arith.constant 0 : index
      %c0_15 = arith.constant 0 : index
      %30 = vector.load %arg7[%c0_14, %c0_15] : memref<4x4xf32, #tpu.memory_space<vmem>>, vector<4x4xf32>
      %cst_16 = arith.constant dense<0.000000e+00> : vector<4x256xf32>
      %31 = tpu.matmul %30, %29, %cst_16 {dimension_numbers = #tpu.dot_dimension_numbers<[1], [0], [0], [1], [0, 0, 1, 1], [], []>} : vector<4x4xf32>, vector<4x256xf32>, vector<4x256xf32> -> vector<4x256xf32>
      %c0_17 = arith.constant 0 : index
      %c0_18 = arith.constant 0 : index
      %32 = vector.load %arg8[%c0_17, %c0_18] : memref<4x1xf32, #tpu.memory_space<vmem>>, vector<4x1xf32>
      %33 = vector.broadcast %32 : vector<4x1xf32> to vector<4x256xf32>
      %34 = arith.addf %31, %33 : vector<4x256xf32>
      %cst_19 = arith.constant 0.000000e+00 : f32
      %35 = vector.broadcast %cst_19 : f32 to vector<4x256xf32>
      %36 = arith.subf %35, %34 : vector<4x256xf32>
      %37 = math.exp %36 : vector<4x256xf32>
      %cst_20 = arith.constant 1.000000e+00 : f32
      %38 = vector.broadcast %cst_20 : f32 to vector<4x256xf32>
      %39 = arith.addf %38, %37 : vector<4x256xf32>
      %40 = tpu.reciprocal %39 {approx = true} : vector<4x256xf32> -> vector<4x256xf32>
      %cst_21 = arith.constant 1.000000e+00 : f32
      %41 = vector.broadcast %cst_21 : f32 to vector<4x256xf32>
      %42 = arith.minimumf %40, %41 : vector<4x256xf32>
      %c0_22 = arith.constant 0 : index
      %c0_23 = arith.constant 0 : index
      %c0_24 = arith.constant 0 : index
      %43 = vector.load %arg9[%c0_22, %c0_23, %c0_24] : memref<1x4x256xf32, #tpu.memory_space<vmem>>, vector<1x4x256xf32>
      %44 = vector.shape_cast %43 : vector<1x4x256xf32> to vector<4x256xf32>
      %45 = vector.shape_cast %42 : vector<4x256xf32> to vector<1x4x256xf32>
      tpu.vector_store %arg9[%c0_22, %c0_23, %c0_24], %45 {strides = array<i32>} : memref<1x4x256xf32, #tpu.memory_space<vmem>>, vector<1x4x256xf32>,
    } else {
    }
    return
  }
  func.func @transform_0(%arg0: i32, %arg1: i32) -> (i32, i32, i32) {
    %c2_i32 = arith.constant 2 : i32
    %0 = arith.cmpi slt, %arg0, %c2_i32 : i32
    %c1_i32 = arith.constant 1 : i32
    %1 = arith.select %0, %arg0, %c1_i32 : i32
    %c2_i32_0 = arith.constant 2 : i32
    %2 = arith.cmpi slt, %arg0, %c2_i32_0 : i32
    %c0_i32 = arith.constant 0 : i32
    %3 = arith.select %2, %arg1, %c0_i32 : i32
    %c0_i32_1 = arith.constant 0 : i32
    %c0_i32_2 = arith.constant 0 : i32
    return %1, %c0_i32_1, %3 : i32, i32, i32
  }
  func.func @transform_1(%arg0: i32, %arg1: i32) -> (i32, i32) {
    %c0_i32 = arith.constant 0 : i32
    %c0_i32_0 = arith.constant 0 : i32
    %c0_i32_1 = arith.constant 0 : i32
    return %c0_i32, %c0_i32_0 : i32, i32
  }
  func.func @transform_2(%arg0: i32, %arg1: i32) -> (i32, i32) {
    %c0_i32 = arith.constant 0 : i32
    %c0_i32_0 = arith.constant 0 : i32
    %c0_i32_1 = arith.constant 0 : i32
    return %c0_i32, %c0_i32_0 : i32, i32
  }
  func.func @transform_3(%arg0: i32, %arg1: i32) -> (i32, i32) {
    %c0_i32 = arith.constant 0 : i32
    %c0_i32_0 = arith.constant 0 : i32
    %c0_i32_1 = arith.constant 0 : i32
    return %c0_i32, %c0_i32_0 : i32, i32
  }
  func.func @transform_4(%arg0: i32, %arg1: i32) -> (i32, i32) {
    %c0_i32 = arith.constant 0 : i32
    %c0_i32_0 = arith.constant 0 : i32
    %c0_i32_1 = arith.constant 0 : i32
    return %c0_i32, %c0_i32_0 : i32, i32
  }
  func.func @transform_5(%arg0: i32, %arg1: i32) -> (i32, i32) {
    %c0_i32 = arith.constant 0 : i32
    %c0_i32_0 = arith.constant 0 : i32
    %c0_i32_1 = arith.constant 0 : i32
    return %c0_i32, %c0_i32_0 : i32, i32
  }
  func.func @transform_6(%arg0: i32, %arg1: i32) -> (i32, i32) {
    %c0_i32 = arith.constant 0 : i32
    %c0_i32_0 = arith.constant 0 : i32
    %c0_i32_1 = arith.constant 0 : i32
    return %c0_i32, %c0_i32_0 : i32, i32
  }
  func.func @transform_7(%arg0: i32, %arg1: i32) -> (i32, i32, i32) {
    %c2_i32 = arith.constant 2 : i32
    %0 = arith.cmpi slt, %arg0, %c2_i32 : i32
    %c2_i32_0 = arith.constant 2 : i32
    %1 = arith.subi %arg0, %c2_i32_0 : i32
    %c0_i32 = arith.constant 0 : i32
    %2 = arith.select %0, %c0_i32, %1 : i32
    %c2_i32_1 = arith.constant 2 : i32
    %3 = arith.cmpi slt, %arg0, %c2_i32_1 : i32
    %c0_i32_2 = arith.constant 0 : i32
    %4 = arith.select %3, %c0_i32_2, %arg1 : i32
    %c0_i32_3 = arith.constant 0 : i32
    %c0_i32_4 = arith.constant 0 : i32
    return %2, %c0_i32_3, %4 : i32, i32, i32
  }
}

</mosaic_0001>

<llo_original>
// kernel: mask_branchout.2
$region0: #{mask_branchout.2}
  #allocation0 [shape = 'u32[]', space=smem, size = 0x4, offset = 0x4, fixed_abs, tag = 'smem constant byte address 0x4 - core index']
  #allocation1 [shape = 'u32[144,128]{1,0:T(1,128)}', space=vmem, size = 0x12000, scoped, tag = 'internal scratch']
  %s0 = inlined_call_operand.vmem [shape: f32[2,4,256], index: 0, kind: input, shape index: {}]
  %s1 = inlined_call_operand.vmem [shape: f32[2,4,2], index: 1, kind: output, shape index: {}]
  %s2 = sld [smem:[#allocation0]]
  $region41: #{mask_branchout.2} parent=0
    _
  %s4 = ssub.s32 1, %s2
  %s5 = scalar_select 0, %s4, %s2
  loop: start=0, step=1, limit=4
  $region2: #{mask_branchout.2} parent=0 // loop_pre_header
    _
  $region3: #{mask_branchout.2} parent=0 // loop_header
    %s7 = sphi 0, %s11
    %p8 = scmp.ge.s32.totalorder %s7, 4
    %s14 = sphi 0, %s26
    %s15 = sphi 0, %s22
    %s16 = sphi 0, %s14
    %s17 = sphi 0, %s15
    %s18 = sphi 0, %s16
    %s19 = sphi 0, %s17
    %s31 = sphi 0, %s33
    %s34 = sphi 0, %s31
    %s35 = sphi 0, %s34
    %s51 = sphi 0, %s35
    %s57 = sphi 0, %s59
    %s60 = sphi 0, %s57
    %s61 = sphi 0, %s60
    %s77 = sphi 0, %s61
  $region4: #{mask_branchout.2} parent=0 // loop_header_branch
    %10 = sbr.rel (%p8) target = $region8
  $region5: #{mask_branchout.2} parent=0 // loop_body
    %s12 = ssub.s32 %s7, 1
    %s13 = ssub.s32 %s7, 2
    %s20 = sadd.s32 1, %s15
    %p21 = scmp.ge.s32.totalorder %s20, 1
    %s22 = scalar_select %p21, 0, %s20
    %s23 = sadd.s32 1, %s14
    %s24 = scalar_select %p21, %s23, %s14
    %p25 = scmp.ge.s32.totalorder %s24, 2
    %s26 = scalar_select %p25, 0, %s24
    %s27 = ssub.s32 %s14, %s26
    %s28 = ssub.s32 %s15, %s22
    %s29 = sor.u32 %s27, %s28
    %p30 = scmp.eq.s32.totalorder %s29, 0
    %s32 = sadd.s32 %s31, 1
    %s33 = scalar_select %p30, %s31, %s32
    %p36 = pneg %p30
    %p37 = scmp.eq.s32.totalorder %s7, 1
    %p38 = por %p36, %p37
    %p39 = scmp.ne.s32.totalorder %s31, %s34
    %p40 = scmp.eq.s32.totalorder %s7, 0
    %p41 = por %p39, %p40
    %p42 = scmp.ne.s32.totalorder %s31, %s34
    %p43 = scmp.eq.s32.totalorder %s12, 1
    %p44 = por %p42, %p43
    %p45 = scmp.ne.s32.totalorder %s34, %s35
    %p46 = scmp.eq.s32.totalorder %s12, 0
    %p47 = por %p45, %p46
    %p48 = scmp.ne.s32.totalorder %s34, %s35
    %p49 = scmp.eq.s32.totalorder %s13, 1
    %p50 = por %p48, %p49
    %p52 = scmp.ne.s32.totalorder %s35, %s51
    %p53 = scmp.eq.s32.totalorder %s13, 0
    %p54 = por %p52, %p53
    %s55 = ssub.s32 %s14, %s26
    %p56 = scmp.eq.s32.totalorder %s55, 0
    %s58 = sadd.s32 %s57, 1
    %s59 = scalar_select %p56, %s57, %s58
    %p62 = pneg %p56
    %p63 = scmp.eq.s32.totalorder %s7, 1
    %p64 = por %p62, %p63
    %p65 = scmp.ne.s32.totalorder %s57, %s60
    %p66 = scmp.eq.s32.totalorder %s7, 0
    %p67 = por %p65, %p66
    %p68 = scmp.ne.s32.totalorder %s57, %s60
    %p69 = scmp.eq.s32.totalorder %s12, 1
    %p70 = por %p68, %p69
    %p71 = scmp.ne.s32.totalorder %s60, %s61
    %p72 = scmp.eq.s32.totalorder %s12, 0
    %p73 = por %p71, %p72
    %p74 = scmp.ne.s32.totalorder %s60, %s61
    %p75 = scmp.eq.s32.totalorder %s13, 1
    %p76 = por %p74, %p75
    %p78 = scmp.ne.s32.totalorder %s61, %s77
    %p79 = scmp.eq.s32.totalorder %s13, 0
    %p80 = por %p78, %p79
    %p81 = scmp.le.s32.totalorder 1, %s7
    %p82 = scmp.lt.s32.totalorder %s7, 3
    %p83 = pnand %p81, %p82
    %p84 = pneg %p83
    // Predicated region
    $region9: #{mask_branchout.2} parent=5 // pred_check
      _
    $region10: #{mask_branchout.2} parent=5 // pred_check_branch
      %86 = sbr.rel (%p83) target = $region12
    $region11: #{mask_branchout.2} parent=5 // pred_region
      %s87 = ssub.s32 %s7, 1
    $region12: #{mask_branchout.2} parent=5 // pred_fallthru
      _
    %p88 = scmp.lt.s32.totalorder %s7, 2
    // Predicated region
    $region13: #{mask_branchout.2} parent=5 // pred_check
      %p89 = pneg %p88
    $region14: #{mask_branchout.2} parent=5 // pred_check_branch
      %91 = sbr.rel (%p89) target = $region16
    $region15: #{mask_branchout.2} parent=5 // pred_region
      // Predicated region
      $region17: #{mask_branchout.2} parent=15 // pred_check
        %p92 = pneg %p41
      $region18: #{mask_branchout.2} parent=15 // pred_check_branch
        %94 = sbr.rel (%p92) target = $region20
      $region19: #{mask_branchout.2} parent=15 // pred_region
        %s95 = smul.u32 2, %s15
        %p96 = scmp.lt.s32.totalorder %s14, 1
        %s97 = scalar_select %p96, %s14, 1
        %p98 = scmp.lt.s32.totalorder %s95, 1
        %s99 = scalar_select %p98, %s95, 1
        %s100 = smul.addr %s97, 2
        %s101 = sadd.s32 %s99, %s100
        %s102 = smul.addr %s101, 4
        %s103 = scalar_lea.vmem %s0, %s102
        %s104 = smul.u32 2, %s15
      $region20: #{mask_branchout.2} parent=15 // pred_fallthru
        _
    $region16: #{mask_branchout.2} parent=5 // pred_fallthru
      _
    %p105 = scmp.le.s32.totalorder 1, %s7
    %p106 = scmp.lt.s32.totalorder %s7, 3
    %p107 = pnand %p105, %p106
    %p108 = pneg %p107
    // Predicated region
    $region21: #{mask_branchout.2} parent=5 // pred_check
      _
    $region22: #{mask_branchout.2} parent=5 // pred_check_branch
      %110 = sbr.rel (%p107) target = $region24
    $region23: #{mask_branchout.2} parent=5 // pred_region
      %s111 = ssub.s32 %s7, 1
      %s112 = smul.u32 2, %s17
      %p113 = scmp.lt.s32.totalorder %s16, 1
      %s114 = scalar_select %p113, %s16, 1
      %p115 = scmp.lt.s32.totalorder %s112, 1
      %s116 = scalar_select %p115, %s112, 1
      %s117 = smul.addr %s114, 2
      %s118 = sadd.s32 %s116, %s117
      %s119 = smul.addr %s118, 4
      %s120 = scalar_lea.vmem %s0, %s119
      %p121 = pneg %p47
      %p122 = pneg %p44
      %p123 = pneg %p73
      %p124 = pneg %p70
      %p125 = scmp.lt.s32.totalorder %s16, 1
      %s126 = scalar_select %p125, %s16, 1
      %s127 = smul.addr %s126, 4
      %s128 = scalar_lea.vmem %s1, %s127
      %s129 = smul.u32 2, %s17
      %p130 = scmp.lt.s32.totalorder %s16, 1
      %s131 = scalar_select %p130, %s16, 1
      %p132 = scmp.lt.s32.totalorder %s129, 1
      %s133 = scalar_select %p132, %s129, 1
      %s134 = smul.addr %s131, 2
      %s135 = sadd.s32 %s133, %s134
      %s136 = smul.addr %s135, 4
      %s137 = scalar_lea.vmem %s0, %s136
      %s138 = smul.u32 2, %s17
      %p139 = scmp.lt.s32.totalorder %s16, 1
      %s140 = scalar_select %p139, %s16, 1
      %s141 = smul.addr %s140, 4
      %s142 = scalar_lea.vmem %s1, %s141
      %p143 = scmp.eq.s32.totalorder %s17, 0
      // Predicated region
      $region25: #{mask_branchout.2} parent=23 // pred_check
        %p144 = pneg %p143
      $region26: #{mask_branchout.2} parent=23 // pred_check_branch
        %146 = sbr.rel (%p144) target = $region28
      $region27: #{mask_branchout.2} parent=23 // pred_region
        %vm147 = vcmask 11264
        %148 = vst.msk [vmem:[%s142] sm:$0xf] %vm147, 0.0
      $region28: #{mask_branchout.2} parent=23 // pred_fallthru
        _
      %v149 = vld [vmem:[%s137] sm:$0xff]
      %v150 = vld [vmem:[%s142] sm:$0xf]
      %v152 = vcombine.high %v149, %v149
      %vm154 = vcmask 1043456
      %v155 = vsel %vm154, %v149, 0.0
      %v156 = vsel %vm154, %v152, 0.0
      %v157 = vadd.f32 %v155, %v156
      %158 = vadd.xlane.f32.xlu0 %v157
      %v159 = vpop.xlane.xlu0 %158
      %v160 = vadd.f32 %v150, %v159
      %vm161 = vcmask 3072
      %162 = vst.msk [vmem:[%s142] sm:$0xf] %vm161, %v160
      %v163 = vld [vmem:[%s142] sm:$0xf]
      %v164 = vmul.f32 %v149, %v149
      %v166 = vcombine.high %v164, %v164
      %v168 = vsel %vm154, %v164, 0.0
      %v169 = vsel %vm154, %v166, 0.0
      %v170 = vadd.f32 %v168, %v169
      %171 = vadd.xlane.f32.xlu0 %v170
      %v172 = vpop.xlane.xlu0 %171
      %v173 = vadd.f32 %v163, %v172
      %vm174 = vcmask 11272
      %175 = vst.msk [vmem:[%s142] sm:$0xf] %vm174, %v173
      %p176 = scmp.lt.s32.totalorder %s16, 1
      %s177 = scalar_select %p176, %s16, 1
      %s178 = smul.addr %s177, 4
      %s179 = scalar_lea.vmem %s1, %s178
      // Predicated region
      $region29: #{mask_branchout.2} parent=23 // pred_check
        %p180 = pneg %p70
      $region30: #{mask_branchout.2} parent=23 // pred_check_branch
        %182 = sbr.rel (%p180) target = $region32
      $region31: #{mask_branchout.2} parent=23 // pred_region
        _
      $region32: #{mask_branchout.2} parent=23 // pred_fallthru
        _
    $region24: #{mask_branchout.2} parent=5 // pred_fallthru
      _
    %p183 = scmp.le.s32.totalorder 2, %s7
    // Predicated region
    $region33: #{mask_branchout.2} parent=5 // pred_check
      %p184 = pneg %p183
    $region34: #{mask_branchout.2} parent=5 // pred_check_branch
      %186 = sbr.rel (%p184) target = $region36
    $region35: #{mask_branchout.2} parent=5 // pred_region
      %s187 = ssub.s32 %s7, 2
      // Predicated region
      $region37: #{mask_branchout.2} parent=35 // pred_check
        %p188 = pneg %p76
      $region38: #{mask_branchout.2} parent=35 // pred_check_branch
        %190 = sbr.rel (%p188) target = $region40
      $region39: #{mask_branchout.2} parent=35 // pred_region
        %p191 = scmp.lt.s32.totalorder %s18, 1
        %s192 = scalar_select %p191, %s18, 1
        %s193 = smul.addr %s192, 4
        %s194 = scalar_lea.vmem %s1, %s193
      $region40: #{mask_branchout.2} parent=35 // pred_fallthru
        _
    $region36: #{mask_branchout.2} parent=5 // pred_fallthru
      _
  $region6: #{mask_branchout.2} parent=0 // loop_footer
    %s11 = sadd.s32 1, %s7
  $region7: #{mask_branchout.2} parent=0 // loop_footer_branch
    %6 = sbr.rel target = $region3
  $region8: #{mask_branchout.2} parent=0 // loop_exit
    _

// kernel: mask_branchout.3
$region0: #{mask_branchout.3}
  #allocation0 [shape = 'u32[]', space=smem, size = 0x4, offset = 0x4, fixed_abs, tag = 'smem constant byte address 0x4 - core index']
  #allocation1 [shape = 'u32[144,128]{1,0:T(1,128)}', space=vmem, size = 0x12000, scoped, tag = 'internal scratch']
  #allocation2 [shape = 'f32[2,4,256]{2,1,0:T(4,128)}', space=vmem, size = 0x2000, scoped, tag = 'scratch operand']
  #allocation3 [shape = 'f32[4,1]{1,0:T(4,128)}', space=vmem, size = 0x800, scoped, tag = 'scratch operand']
  #allocation4 [shape = 'f32[4,1]{1,0:T(4,128)}', space=vmem, size = 0x800, scoped, tag = 'scratch operand']
  #allocation5 [shape = 'f32[4,1]{1,0:T(4,128)}', space=vmem, size = 0x800, scoped, tag = 'scratch operand']
  #allocation6 [shape = 'f32[4,1]{1,0:T(4,128)}', space=vmem, size = 0x800, scoped, tag = 'scratch operand']
  %s0 = inlined_call_operand.vmem [shape: f32[2,4,256], index: 0, kind: input, shape index: {}]
  %s1 = inlined_call_operand.vmem [shape: f32[4,1], index: 1, kind: input, shape index: {}]
  %s2 = inlined_call_operand.vmem [shape: f32[4,1], index: 2, kind: input, shape index: {}]
  %s3 = inlined_call_operand.vmem [shape: f32[4,1], index: 3, kind: input, shape index: {}]
  %s4 = inlined_call_operand.vmem [shape: f32[4,1], index: 4, kind: input, shape index: {}]
  %s5 = inlined_call_operand.vmem [shape: f32[4,4], index: 5, kind: input, shape index: {}]
  %s6 = inlined_call_operand.vmem [shape: f32[4,1], index: 6, kind: input, shape index: {}]
  %s7 = inlined_call_operand.vmem [shape: f32[2,4,256], index: 7, kind: output, shape index: {}]
  %s8 = sld [smem:[#allocation0]]
  $region77: #{mask_branchout.3} parent=0
    _
  %s10 = ssub.s32 1, %s8
  %s11 = scalar_select 0, %s10, %s8
  loop: start=0, step=1, limit=6
  $region2: #{mask_branchout.3} parent=0 // loop_pre_header
    _
  $region3: #{mask_branchout.3} parent=0 // loop_header
    %s13 = sphi 0, %s17
    %p14 = scmp.ge.s32.totalorder %s13, 6
    %s20 = sphi 0, %s32
    %s21 = sphi 0, %s28
    %s22 = sphi 0, %s20
    %s23 = sphi 0, %s21
    %s24 = sphi 0, %s22
    %s25 = sphi 0, %s23
    %s43 = sphi 0, %s45
    %s46 = sphi 0, %s43
    %s47 = sphi 0, %s46
    %s63 = sphi 0, %s47
    %s67 = sphi 0, %s67
    %s69 = sphi 0, %s67
    %s70 = sphi 0, %s69
    %s84 = sphi 0, %s70
    %s88 = sphi 0, %s88
    %s90 = sphi 0, %s88
    %s91 = sphi 0, %s90
    %s105 = sphi 0, %s91
    %s109 = sphi 0, %s109
    %s111 = sphi 0, %s109
    %s112 = sphi 0, %s111
    %s126 = sphi 0, %s112
    %s130 = sphi 0, %s130
    %s132 = sphi 0, %s130
    %s133 = sphi 0, %s132
    %s147 = sphi 0, %s133
    %s151 = sphi 0, %s151
    %s153 = sphi 0, %s151
    %s154 = sphi 0, %s153
    %s168 = sphi 0, %s154
    %s172 = sphi 0, %s172
    %s174 = sphi 0, %s172
    %s175 = sphi 0, %s174
    %s189 = sphi 0, %s175
    %s205 = sphi 0, %s207
    %s208 = sphi 0, %s205
    %s209 = sphi 0, %s208
    %s225 = sphi 0, %s209
  $region4: #{mask_branchout.3} parent=0 // loop_header_branch
    %16 = sbr.rel (%p14) target = $region8
  $region5: #{mask_branchout.3} parent=0 // loop_body
    %s18 = ssub.s32 %s13, 1
    %s19 = ssub.s32 %s13, 2
    %s26 = sadd.s32 1, %s21
    %p27 = scmp.ge.s32.totalorder %s26, 1
    %s28 = scalar_select %p27, 0, %s26
    %s29 = sadd.s32 1, %s20
    %s30 = scalar_select %p27, %s29, %s20
    %p31 = scmp.ge.s32.totalorder %s30, 4
    %s32 = scalar_select %p31, 0, %s30
    %p33 = scmp.lt.s32.totalorder %s20, 2
    %s34 = scalar_select %p33, %s20, 1
    %s35 = scalar_select %p33, %s21, 0
    %p36 = scmp.lt.s32.totalorder %s32, 2
    %s37 = scalar_select %p36, %s32, 1
    %s38 = scalar_select %p36, %s28, 0
    %s39 = ssub.s32 %s34, %s37
    %s40 = ssub.s32 %s35, %s38
    %s41 = sor.u32 %s39, %s40
    %p42 = scmp.eq.s32.totalorder %s41, 0
    %s44 = sadd.s32 %s43, 1
    %s45 = scalar_select %p42, %s43, %s44
    %p48 = pneg %p42
    %p49 = scmp.eq.s32.totalorder %s13, 3
    %p50 = por %p48, %p49
    %p51 = scmp.ne.s32.totalorder %s43, %s46
    %p52 = scmp.eq.s32.totalorder %s13, 0
    %p53 = por %p51, %p52
    %p54 = scmp.ne.s32.totalorder %s43, %s46
    %p55 = scmp.eq.s32.totalorder %s18, 3
    %p56 = por %p54, %p55
    %p57 = scmp.ne.s32.totalorder %s46, %s47
    %p58 = scmp.eq.s32.totalorder %s18, 0
    %p59 = por %p57, %p58
    %p60 = scmp.ne.s32.totalorder %s46, %s47
    %p61 = scmp.eq.s32.totalorder %s19, 3
    %p62 = por %p60, %p61
    %p64 = scmp.ne.s32.totalorder %s47, %s63
    %p65 = scmp.eq.s32.totalorder %s19, 0
    %p66 = por %p64, %p65
    %s68 = sadd.s32 %s67, 1
    %p71 = scmp.eq.s32.totalorder %s13, 3
    %p72 = scmp.ne.s32.totalorder %s67, %s69
    %p73 = scmp.eq.s32.totalorder %s13, 0
    %p74 = por %p72, %p73
    %p75 = scmp.ne.s32.totalorder %s67, %s69
    %p76 = scmp.eq.s32.totalorder %s18, 3
    %p77 = por %p75, %p76
    %p78 = scmp.ne.s32.totalorder %s69, %s70
    %p79 = scmp.eq.s32.totalorder %s18, 0
    %p80 = por %p78, %p79
    %p81 = scmp.ne.s32.totalorder %s69, %s70
    %p82 = scmp.eq.s32.totalorder %s19, 3
    %p83 = por %p81, %p82
    %p85 = scmp.ne.s32.totalorder %s70, %s84
    %p86 = scmp.eq.s32.totalorder %s19, 0
    %p87 = por %p85, %p86
    %s89 = sadd.s32 %s88, 1
    %p92 = scmp.eq.s32.totalorder %s13, 3
    %p93 = scmp.ne.s32.totalorder %s88, %s90
    %p94 = scmp.eq.s32.totalorder %s13, 0
    %p95 = por %p93, %p94
    %p96 = scmp.ne.s32.totalorder %s88, %s90
    %p97 = scmp.eq.s32.totalorder %s18, 3
    %p98 = por %p96, %p97
    %p99 = scmp.ne.s32.totalorder %s90, %s91
    %p100 = scmp.eq.s32.totalorder %s18, 0
    %p101 = por %p99, %p100
    %p102 = scmp.ne.s32.totalorder %s90, %s91
    %p103 = scmp.eq.s32.totalorder %s19, 3
    %p104 = por %p102, %p103
    %p106 = scmp.ne.s32.totalorder %s91, %s105
    %p107 = scmp.eq.s32.totalorder %s19, 0
    %p108 = por %p106, %p107
    %s110 = sadd.s32 %s109, 1
    %p113 = scmp.eq.s32.totalorder %s13, 3
    %p114 = scmp.ne.s32.totalorder %s109, %s111
    %p115 = scmp.eq.s32.totalorder %s13, 0
    %p116 = por %p114, %p115
    %p117 = scmp.ne.s32.totalorder %s109, %s111
    %p118 = scmp.eq.s32.totalorder %s18, 3
    %p119 = por %p117, %p118
    %p120 = scmp.ne.s32.totalorder %s111, %s112
    %p121 = scmp.eq.s32.totalorder %s18, 0
    %p122 = por %p120, %p121
    %p123 = scmp.ne.s32.totalorder %s111, %s112
    %p124 = scmp.eq.s32.totalorder %s19, 3
    %p125 = por %p123, %p124
    %p127 = scmp.ne.s32.totalorder %s112, %s126
    %p128 = scmp.eq.s32.totalorder %s19, 0
    %p129 = por %p127, %p128
    %s131 = sadd.s32 %s130, 1
    %p134 = scmp.eq.s32.totalorder %s13, 3
    %p135 = scmp.ne.s32.totalorder %s130, %s132
    %p136 = scmp.eq.s32.totalorder %s13, 0
    %p137 = por %p135, %p136
    %p138 = scmp.ne.s32.totalorder %s130, %s132
    %p139 = scmp.eq.s32.totalorder %s18, 3
    %p140 = por %p138, %p139
    %p141 = scmp.ne.s32.totalorder %s132, %s133
    %p142 = scmp.eq.s32.totalorder %s18, 0
    %p143 = por %p141, %p142
    %p144 = scmp.ne.s32.totalorder %s132, %s133
    %p145 = scmp.eq.s32.totalorder %s19, 3
    %p146 = por %p144, %p145
    %p148 = scmp.ne.s32.totalorder %s133, %s147
    %p149 = scmp.eq.s32.totalorder %s19, 0
    %p150 = por %p148, %p149
    %s152 = sadd.s32 %s151, 1
    %p155 = scmp.eq.s32.totalorder %s13, 3
    %p156 = scmp.ne.s32.totalorder %s151, %s153
    %p157 = scmp.eq.s32.totalorder %s13, 0
    %p158 = por %p156, %p157
    %p159 = scmp.ne.s32.totalorder %s151, %s153
    %p160 = scmp.eq.s32.totalorder %s18, 3
    %p161 = por %p159, %p160
    %p162 = scmp.ne.s32.totalorder %s153, %s154
    %p163 = scmp.eq.s32.totalorder %s18, 0
    %p164 = por %p162, %p163
    %p165 = scmp.ne.s32.totalorder %s153, %s154
    %p166 = scmp.eq.s32.totalorder %s19, 3
    %p167 = por %p165, %p166
    %p169 = scmp.ne.s32.totalorder %s154, %s168
    %p170 = scmp.eq.s32.totalorder %s19, 0
    %p171 = por %p169, %p170
    %s173 = sadd.s32 %s172, 1
    %p176 = scmp.eq.s32.totalorder %s13, 3
    %p177 = scmp.ne.s32.totalorder %s172, %s174
    %p178 = scmp.eq.s32.totalorder %s13, 0
    %p179 = por %p177, %p178
    %p180 = scmp.ne.s32.totalorder %s172, %s174
    %p181 = scmp.eq.s32.totalorder %s18, 3
    %p182 = por %p180, %p181
    %p183 = scmp.ne.s32.totalorder %s174, %s175
    %p184 = scmp.eq.s32.totalorder %s18, 0
    %p185 = por %p183, %p184
    %p186 = scmp.ne.s32.totalorder %s174, %s175
    %p187 = scmp.eq.s32.totalorder %s19, 3
    %p188 = por %p186, %p187
    %p190 = scmp.ne.s32.totalorder %s175, %s189
    %p191 = scmp.eq.s32.totalorder %s19, 0
    %p192 = por %p190, %p191
    %p193 = scmp.lt.s32.totalorder %s20, 2
    %s194 = ssub.s32 %s20, 2
    %s195 = scalar_select %p193, 0, %s194
    %s196 = scalar_select %p193, 0, %s21
    %p197 = scmp.lt.s32.totalorder %s32, 2
    %s198 = ssub.s32 %s32, 2
    %s199 = scalar_select %p197, 0, %s198
    %s200 = scalar_select %p197, 0, %s28
    %s201 = ssub.s32 %s195, %s199
    %s202 = ssub.s32 %s196, %s200
    %s203 = sor.u32 %s201, %s202
    %p204 = scmp.eq.s32.totalorder %s203, 0
    %s206 = sadd.s32 %s205, 1
    %s207 = scalar_select %p204, %s205, %s206
    %p210 = pneg %p204
    %p211 = scmp.eq.s32.totalorder %s13, 3
    %p212 = por %p210, %p211
    %p213 = scmp.ne.s32.totalorder %s205, %s208
    %p214 = scmp.eq.s32.totalorder %s13, 0
    %p215 = por %p213, %p214
    %p216 = scmp.ne.s32.totalorder %s205, %s208
    %p217 = scmp.eq.s32.totalorder %s18, 3
    %p218 = por %p216, %p217
    %p219 = scmp.ne.s32.totalorder %s208, %s209
    %p220 = scmp.eq.s32.totalorder %s18, 0
    %p221 = por %p219, %p220
    %p222 = scmp.ne.s32.totalorder %s208, %s209
    %p223 = scmp.eq.s32.totalorder %s19, 3
    %p224 = por %p222, %p223
    %p226 = scmp.ne.s32.totalorder %s209, %s225
    %p227 = scmp.eq.s32.totalorder %s19, 0
    %p228 = por %p226, %p227
    %p229 = scmp.le.s32.totalorder 1, %s13
    %p230 = scmp.lt.s32.totalorder %s13, 5
    %p231 = pnand %p229, %p230
    %p232 = pneg %p231
    // Predicated region
    $region9: #{mask_branchout.3} parent=5 // pred_check
      _
    $region10: #{mask_branchout.3} parent=5 // pred_check_branch
      %234 = sbr.rel (%p231) target = $region12
    $region11: #{mask_branchout.3} parent=5 // pred_region
      %s235 = ssub.s32 %s13, 1
      // Predicated region
      $region13: #{mask_branchout.3} parent=11 // pred_check
        %p236 = pneg %p80
      $region14: #{mask_branchout.3} parent=11 // pred_check_branch
        %238 = sbr.rel (%p236) target = $region16
      $region15: #{mask_branchout.3} parent=11 // pred_region
        _
      $region16: #{mask_branchout.3} parent=11 // pred_fallthru
        _
      // Predicated region
      $region17: #{mask_branchout.3} parent=11 // pred_check
        %p239 = pneg %p101
      $region18: #{mask_branchout.3} parent=11 // pred_check_branch
        %241 = sbr.rel (%p239) target = $region20
      $region19: #{mask_branchout.3} parent=11 // pred_region
        _
      $region20: #{mask_branchout.3} parent=11 // pred_fallthru
        _
      // Predicated region
      $region21: #{mask_branchout.3} parent=11 // pred_check
        %p242 = pneg %p122
      $region22: #{mask_branchout.3} parent=11 // pred_check_branch
        %244 = sbr.rel (%p242) target = $region24
      $region23: #{mask_branchout.3} parent=11 // pred_region
        _
      $region24: #{mask_branchout.3} parent=11 // pred_fallthru
        _
      // Predicated region
      $region25: #{mask_branchout.3} parent=11 // pred_check
        %p245 = pneg %p143
      $region26: #{mask_branchout.3} parent=11 // pred_check_branch
        %247 = sbr.rel (%p245) target = $region28
      $region27: #{mask_branchout.3} parent=11 // pred_region
        _
      $region28: #{mask_branchout.3} parent=11 // pred_fallthru
        _
      // Predicated region
      $region29: #{mask_branchout.3} parent=11 // pred_check
        %p248 = pneg %p164
      $region30: #{mask_branchout.3} parent=11 // pred_check_branch
        %250 = sbr.rel (%p248) target = $region32
      $region31: #{mask_branchout.3} parent=11 // pred_region
        _
      $region32: #{mask_branchout.3} parent=11 // pred_fallthru
        _
      // Predicated region
      $region33: #{mask_branchout.3} parent=11 // pred_check
        %p251 = pneg %p185
      $region34: #{mask_branchout.3} parent=11 // pred_check_branch
        %253 = sbr.rel (%p251) target = $region36
      $region35: #{mask_branchout.3} parent=11 // pred_region
        _
      $region36: #{mask_branchout.3} parent=11 // pred_fallthru
        _
    $region12: #{mask_branchout.3} parent=5 // pred_fallthru
      _
    %p254 = scmp.lt.s32.totalorder %s13, 4
    // Predicated region
    $region37: #{mask_branchout.3} parent=5 // pred_check
      %p255 = pneg %p254
    $region38: #{mask_branchout.3} parent=5 // pred_check_branch
      %257 = sbr.rel (%p255) target = $region40
    $region39: #{mask_branchout.3} parent=5 // pred_region
      // Predicated region
      $region41: #{mask_branchout.3} parent=39 // pred_check
        %p258 = pneg %p53
      $region42: #{mask_branchout.3} parent=39 // pred_check_branch
        %260 = sbr.rel (%p258) target = $region44
      $region43: #{mask_branchout.3} parent=39 // pred_region
        %p261 = scmp.lt.s32.totalorder %s20, 2
        %s262 = scalar_select %p261, %s20, 1
        %s263 = scalar_select %p261, %s21, 0
        %s264 = smul.u32 2, %s263
        %p265 = scmp.lt.s32.totalorder %s262, 1
        %s266 = scalar_select %p265, %s262, 1
        %p267 = scmp.lt.s32.totalorder %s264, 1
        %s268 = scalar_select %p267, %s264, 1
        %s269 = smul.addr %s266, 2
        %s270 = sadd.s32 %s268, %s269
        %s271 = smul.addr %s270, 4
        %s272 = scalar_lea.vmem %s0, %s271
        %p273 = scmp.lt.s32.totalorder %s20, 2
        %s274 = scalar_select %p273, %s20, 1
        %s275 = scalar_select %p273, %s21, 0
        %s276 = smul.u32 2, %s275
      $region44: #{mask_branchout.3} parent=39 // pred_fallthru
        _
    $region40: #{mask_branchout.3} parent=5 // pred_fallthru
      _
    %p277 = scmp.le.s32.totalorder 1, %s13
    %p278 = scmp.lt.s32.totalorder %s13, 5
    %p279 = pnand %p277, %p278
    %p280 = pneg %p279
    // Predicated region
    $region45: #{mask_branchout.3} parent=5 // pred_check
      _
    $region46: #{mask_branchout.3} parent=5 // pred_check_branch
      %282 = sbr.rel (%p279) target = $region48
    $region47: #{mask_branchout.3} parent=5 // pred_region
      %s283 = ssub.s32 %s13, 1
      %p284 = scmp.lt.s32.totalorder %s22, 2
      %s285 = scalar_select %p284, %s22, 1
      %s286 = scalar_select %p284, %s23, 0
      %s287 = smul.u32 2, %s286
      %p288 = scmp.lt.s32.totalorder %s285, 1
      %s289 = scalar_select %p288, %s285, 1
      %p290 = scmp.lt.s32.totalorder %s287, 1
      %s291 = scalar_select %p290, %s287, 1
      %s292 = smul.addr %s289, 2
      %s293 = sadd.s32 %s291, %s292
      %s294 = smul.addr %s293, 4
      %s295 = scalar_lea.vmem %s0, %s294
      %p296 = pneg %p59
      %p297 = pneg %p56
      %p298 = pneg %p80
      %p299 = pneg %p77
      %p300 = pneg %p101
      %p301 = pneg %p98
      %p302 = pneg %p122
      %p303 = pneg %p119
      %p304 = pneg %p143
      %p305 = pneg %p140
      %p306 = pneg %p164
      %p307 = pneg %p161
      %p308 = pneg %p185
      %p309 = pneg %p182
      %p310 = pneg %p221
      %p311 = pneg %p218
      %p312 = scmp.lt.s32.totalorder %s22, 2
      %s313 = ssub.s32 %s22, 2
      %s314 = scalar_select %p312, 0, %s313
      %s315 = scalar_select %p312, 0, %s23
      %s316 = smul.u32 2, %s315
      %p317 = scmp.lt.s32.totalorder %s314, 1
      %s318 = scalar_select %p317, %s314, 1
      %p319 = scmp.lt.s32.totalorder %s316, 1
      %s320 = scalar_select %p319, %s316, 1
      %s321 = smul.addr %s318, 2
      %s322 = sadd.s32 %s320, %s321
      %s323 = smul.addr %s322, 4
      %s324 = scalar_lea.vmem %s7, %s323
      %p325 = scmp.lt.s32.totalorder %s22, 2
      %s326 = scalar_select %p325, %s22, 1
      %s327 = scalar_select %p325, %s23, 0
      %s328 = smul.u32 2, %s327
      %p329 = scmp.lt.s32.totalorder %s326, 1
      %s330 = scalar_select %p329, %s326, 1
      %p331 = scmp.lt.s32.totalorder %s328, 1
      %s332 = scalar_select %p331, %s328, 1
      %s333 = smul.addr %s330, 2
      %s334 = sadd.s32 %s332, %s333
      %s335 = smul.addr %s334, 4
      %s336 = scalar_lea.vmem %s0, %s335
      %p337 = scmp.lt.s32.totalorder %s22, 2
      %s338 = scalar_select %p337, %s22, 1
      %s339 = scalar_select %p337, %s23, 0
      %s340 = smul.u32 2, %s339
      %p341 = scmp.lt.s32.totalorder %s22, 2
      %s342 = ssub.s32 %s22, 2
      %s343 = scalar_select %p341, 0, %s342
      %s344 = scalar_select %p341, 0, %s23
      %s345 = smul.u32 2, %s344
      %p346 = scmp.lt.s32.totalorder %s343, 1
      %s347 = scalar_select %p346, %s343, 1
      %p348 = scmp.lt.s32.totalorder %s345, 1
      %s349 = scalar_select %p348, %s345, 1
      %s350 = smul.addr %s347, 2
      %s351 = sadd.s32 %s349, %s350
      %s352 = smul.addr %s351, 4
      %s353 = scalar_lea.vmem %s7, %s352
      %p354 = scmp.lt.s32.totalorder %s22, 2
      %s355 = ssub.s32 %s22, 2
      %s356 = scalar_select %p354, 0, %s355
      %s357 = scalar_select %p354, 0, %s23
      %s358 = smul.u32 2, %s357
      %p359 = scmp.eq.s32.totalorder %s22, 0
      %p360 = scmp.eq.s32.totalorder %s23, 0
      %p361 = pnand %p359, %p360
      %p362 = pneg %p361
      // Predicated region
      $region49: #{mask_branchout.3} parent=47 // pred_check
        _
      $region50: #{mask_branchout.3} parent=47 // pred_check_branch
        %364 = sbr.rel (%p361) target = $region52
      $region51: #{mask_branchout.3} parent=47 // pred_region
        %vm365 = vcmask 3072
        %366 = vst.msk [vmem:[#allocation3] sm:$0xf] %vm365, 0.0
        %367 = vst.msk [vmem:[#allocation4] sm:$0xf] %vm365, 0.0
      $region52: #{mask_branchout.3} parent=47 // pred_fallthru
        _
      %p368 = scmp.lt.s32.totalorder %s22, 2
      // Predicated region
      $region53: #{mask_branchout.3} parent=47 // pred_check
        %p369 = pneg %p368
      $region54: #{mask_branchout.3} parent=47 // pred_check_branch
        %371 = sbr.rel (%p369) target = $region56
      $region55: #{mask_branchout.3} parent=47 // pred_region
        %v372 = vld [vmem:[%s336] sm:$0xff]
        %v373 = vld [vmem:[%s1] sm:$0xf]
        %375 = vset.pattern.permute.xlu0 0
        %376 = vperm.xlu0 %375, %v373
        %v377 = vpop.permute.xlu0 %376
        %v379 = vunpack.c.l.s4 839922192
        %v380 = vunpack.c.0.s8 %v379
        %v381 = vlaneseq
        %v382 = vshrl.u32 %v381, 7
        %v383 = vsub.s32 %v380, %v382
        %v384 = vrot.slane %v377, %v383
        %v386 = vmul.f32 %v372, %v384
        %v387 = vld [vmem:[%s2] sm:$0xf]
        %389 = vset.pattern.permute.xlu0 0
        %390 = vperm.xlu0 %389, %v387
        %v391 = vpop.permute.xlu0 %390
        %v393 = vunpack.c.l.s4 839922192
        %v394 = vunpack.c.0.s8 %v393
        %v395 = vlaneseq
        %v396 = vshrl.u32 %v395, 7
        %v397 = vsub.s32 %v394, %v396
        %v398 = vrot.slane %v391, %v397
        %v400 = vadd.f32 %v386, %v398
        %v401 = vmax.f32 %v400, 0.0
        %v402 = vld [vmem:[%s5] sm:$0xf]
        %v403 = vld [vmem:[%s6] sm:$0xf]
        %405 = vset.pattern.permute.xlu0 0
        %406 = vperm.xlu0 %405, %v403
        %v407 = vpop.permute.xlu0 %406
        %v410 = vcombine.high %v401, %v401
        %vm411 = vcmask 31744
        %v413 = vsel %vm411, %v402, 0
        %vm415 = vcmask 1043456
        %v416 = vsel %vm415, %v401, 0
        %v418 = vsel %vm415, %v410, 0
        %420 = vmatprep.subr.mxu0 %v418
        %421 = vmatpush1.msra.mxu0 %v416
        %422 = vmatprep.subr.mxu0 0.0
        %423 = vmatpush1.msra.mxu0 0.0
        %424 = vmatprep.subr.mxu0 0.0
        %425 = vmatpush1.msra.mxu0 0.0
        %426 = vmatprep.subr.mxu0 0.0
        %427 = vmatpush1.msra.mxu0 0.0
        %428 = vmatprep.subr.mxu0 0.0
        %429 = vmatpush1.msra.mxu0 0.0
        %430 = vmatprep.subr.mxu0 0.0
        %431 = vmatpush1.msra.mxu0 0.0
        %432 = vmatprep.subr.mxu0 0.0
        %433 = vmatpush1.msra.mxu0 0.0
        %434 = vmatprep.subr.mxu0 0.0
        %435 = vmatpush1.msra.mxu0 0.0
        %436 = vmatprep.subr.mxu0 0.0
        %437 = vmatpush1.msra.mxu0 0.0
        %438 = vmatprep.subr.mxu0 0.0
        %439 = vmatpush1.msra.mxu0 0.0
        %440 = vmatprep.subr.mxu0 0.0
        %441 = vmatpush1.msra.mxu0 0.0
        %442 = vmatprep.subr.mxu0 0.0
        %443 = vmatpush1.msra.mxu0 0.0
        %444 = vmatprep.subr.mxu0 0.0
        %445 = vmatpush1.msra.mxu0 0.0
        %446 = vmatprep.subr.mxu0 0.0
        %447 = vmatpush1.msra.mxu0 0.0
        %448 = vmatprep.subr.mxu0 0.0
        %449 = vmatpush1.msra.mxu0 0.0
        %450 = vmatprep.subr.mxu0 0.0
        %451 = vmatpush1.msra.mxu0 0.0
        %452 = vmatprep.subr.mxu0 0.0
        %453 = vmatpush1.msra.mxu0 0.0
        %454 = vmatprep.subr.mxu0 0.0
        %455 = vmatpush1.msra.mxu0 0.0
        %456 = vmatprep.subr.mxu0 0.0
        %457 = vmatpush1.msra.mxu0 0.0
        %458 = vmatprep.subr.mxu0 0.0
        %459 = vmatpush1.msra.mxu0 0.0
        %460 = vmatprep.subr.mxu0 0.0
        %461 = vmatpush1.msra.mxu0 0.0
        %462 = vmatprep.subr.mxu0 0.0
        %463 = vmatpush1.msra.mxu0 0.0
        %464 = vmatprep.subr.mxu0 0.0
        %465 = vmatpush1.msra.mxu0 0.0
        %466 = vmatprep.subr.mxu0 0.0
        %467 = vmatpush1.msra.mxu0 0.0
        %468 = vmatprep.subr.mxu0 0.0
        %469 = vmatpush1.msra.mxu0 0.0
        %470 = vmatprep.subr.mxu0 0.0
        %471 = vmatpush1.msra.mxu0 0.0
        %472 = vmatprep.subr.mxu0 0.0
        %473 = vmatpush1.msra.mxu0 0.0
        %474 = vmatprep.subr.mxu0 0.0
        %475 = vmatpush1.msra.mxu0 0.0
        %476 = vmatprep.subr.mxu0 0.0
        %477 = vmatpush1.msra.mxu0 0.0
        %478 = vmatprep.subr.mxu0 0.0
        %479 = vmatpush1.msra.mxu0 0.0
        %480 = vmatprep.subr.mxu0 0.0
        %481 = vmatpush1.msra.mxu0 0.0
        %482 = vmatprep.subr.mxu0 0.0
        %483 = vmatpush1.msra.mxu0 0.0
        %484 = vmatprep.mubr.f32.mxu0 0.0
        %485 = vmatmul.mubr.f32.gmra.mrb[0].mxu0 %v413
        %v486 = vpop.f32.mrb[0].mxu0
        %v487 = vadd.f32 %v407, %v486
        %v488 = vpop.f32.mrb[0].mxu0
        %v489 = vadd.f32 %v407, %v488
        %490 = vdwg.mxu0
        %s491 = sadd.s32 %s22, %s23
        %v494 = vcombine.low %v487, %v489
        %s496 = smul.u32 %s491, 2
        %s497 = smul.addr %s496, 4
        %s498 = scalar_lea.vmem [#allocation2], %s497
        %499 = vst [vmem:[%s498] sm:$0xff] %v494
        %v500 = vld [vmem:[#allocation3] sm:$0xf]
        %v501 = vsel %vm415, %v487, 0.0
        %v502 = vsel %vm415, %v489, 0.0
        %v503 = vadd.f32 %v501, %v502
        %504 = vadd.xlane.f32.xlu0 %v503
        %v505 = vpop.xlane.xlu0 %504
        %v506 = vadd.f32 %v500, %v505
        %vm507 = vcmask 3072
        %508 = vst.msk [vmem:[#allocation3] sm:$0xf] %vm507, %v506
        %v509 = vld [vmem:[#allocation4] sm:$0xf]
        %v510 = vmul.f32 %v487, %v487
        %v511 = vmul.f32 %v489, %v489
        %v512 = vsel %vm415, %v510, 0.0
        %v513 = vsel %vm415, %v511, 0.0
        %v514 = vadd.f32 %v512, %v513
        %515 = vadd.xlane.f32.xlu0 %v514
        %v516 = vpop.xlane.xlu0 %515
        %v517 = vadd.f32 %v509, %v516
        %518 = vst.msk [vmem:[#allocation4] sm:$0xf] %vm507, %v517
      $region56: #{mask_branchout.3} parent=47 // pred_fallthru
        _
      %p519 = scmp.eq.s32.totalorder %s22, 2
      %p520 = pnand %p519, %p360
      %p521 = pneg %p520
      // Predicated region
      $region57: #{mask_branchout.3} parent=47 // pred_check
        _
      $region58: #{mask_branchout.3} parent=47 // pred_check_branch
        %523 = sbr.rel (%p520) target = $region60
      $region59: #{mask_branchout.3} parent=47 // pred_region
        %v524 = vld [vmem:[#allocation3] sm:$0xf]
        %v525 = vmul.f32 %v524, 0.001953125
        %v526 = vld [vmem:[#allocation4] sm:$0xf]
        %v527 = vmul.f32 %v526, 0.001953125
        %v528 = vmul.f32 %v525, %v525
        %v529 = vsub.f32 %v527, %v528
        %v530 = vld [vmem:[%s3] sm:$0xf]
        %v531 = vadd.f32 %v529, 1e-05
        %v532 = vrsqrt.pop %v531
        %v533 = vmul.f32 %v530, %v532
        %vm534 = vcmask 3072
        %535 = vst.msk [vmem:[#allocation5] sm:$0xf] %vm534, %v533
        %v536 = vld [vmem:[%s4] sm:$0xf]
        %v537 = vmul.f32 %v525, %v533
        %v538 = vsub.f32 %v536, %v537
        %539 = vst.msk [vmem:[#allocation6] sm:$0xf] %vm534, %v538
      $region60: #{mask_branchout.3} parent=47 // pred_fallthru
        _
      %p540 = scmp.ge.s32.totalorder %s22, 2
      // Predicated region
      $region61: #{mask_branchout.3} parent=47 // pred_check
        %p541 = pneg %p540
      $region62: #{mask_branchout.3} parent=47 // pred_check_branch
        %543 = sbr.rel (%p541) target = $region64
      $region63: #{mask_branchout.3} parent=47 // pred_region
        %s544 = ssub.s32 %s22, 2
        %s545 = sadd.s32 %s544, %s23
        %s546 = smul.u32 %s545, 2
        %s547 = smul.addr %s546, 4
        %s548 = scalar_lea.vmem [#allocation2], %s547
        %v549 = vld [vmem:[%s548] sm:$0xff]
        %v550 = vld [vmem:[#allocation5] sm:$0xf]
        %552 = vset.pattern.permute.xlu0 0
        %553 = vperm.xlu0 %552, %v550
        %v554 = vpop.permute.xlu0 %553
        %v556 = vunpack.c.l.s4 839922192
        %v557 = vunpack.c.0.s8 %v556
        %v558 = vlaneseq
        %v559 = vshrl.u32 %v558, 7
        %v560 = vsub.s32 %v557, %v559
        %v561 = vrot.slane %v554, %v560
        %v563 = vmul.f32 %v549, %v561
        %v564 = vld [vmem:[#allocation6] sm:$0xf]
        %566 = vset.pattern.permute.xlu0 0
        %567 = vperm.xlu0 %566, %v564
        %v568 = vpop.permute.xlu0 %567
        %v570 = vunpack.c.l.s4 839922192
        %v571 = vunpack.c.0.s8 %v570
        %v572 = vlaneseq
        %v573 = vshrl.u32 %v572, 7
        %v574 = vsub.s32 %v571, %v573
        %v575 = vrot.slane %v568, %v574
        %v577 = vadd.f32 %v563, %v575
        %v578 = vmax.f32 %v577, 0.0
        %v579 = vld [vmem:[%s5] sm:$0xf]
        %v580 = vld [vmem:[%s6] sm:$0xf]
        %582 = vset.pattern.permute.xlu0 0
        %583 = vperm.xlu0 %582, %v580
        %v584 = vpop.permute.xlu0 %583
        %v587 = vcombine.high %v578, %v578
        %vm588 = vcmask 31744
        %v590 = vsel %vm588, %v579, 0
        %vm592 = vcmask 1043456
        %v593 = vsel %vm592, %v578, 0
        %v595 = vsel %vm592, %v587, 0
        %597 = vmatprep.subr.mxu0 %v595
        %598 = vmatpush1.msra.mxu0 %v593
        %599 = vmatprep.subr.mxu0 0.0
        %600 = vmatpush1.msra.mxu0 0.0
        %601 = vmatprep.subr.mxu0 0.0
        %602 = vmatpush1.msra.mxu0 0.0
        %603 = vmatprep.subr.mxu0 0.0
        %604 = vmatpush1.msra.mxu0 0.0
        %605 = vmatprep.subr.mxu0 0.0
        %606 = vmatpush1.msra.mxu0 0.0
        %607 = vmatprep.subr.mxu0 0.0
        %608 = vmatpush1.msra.mxu0 0.0
        %609 = vmatprep.subr.mxu0 0.0
        %610 = vmatpush1.msra.mxu0 0.0
        %611 = vmatprep.subr.mxu0 0.0
        %612 = vmatpush1.msra.mxu0 0.0
        %613 = vmatprep.subr.mxu0 0.0
        %614 = vmatpush1.msra.mxu0 0.0
        %615 = vmatprep.subr.mxu0 0.0
        %616 = vmatpush1.msra.mxu0 0.0
        %617 = vmatprep.subr.mxu0 0.0
        %618 = vmatpush1.msra.mxu0 0.0
        %619 = vmatprep.subr.mxu0 0.0
        %620 = vmatpush1.msra.mxu0 0.0
        %621 = vmatprep.subr.mxu0 0.0
        %622 = vmatpush1.msra.mxu0 0.0
        %623 = vmatprep.subr.mxu0 0.0
        %624 = vmatpush1.msra.mxu0 0.0
        %625 = vmatprep.subr.mxu0 0.0
        %626 = vmatpush1.msra.mxu0 0.0
        %627 = vmatprep.subr.mxu0 0.0
        %628 = vmatpush1.msra.mxu0 0.0
        %629 = vmatprep.subr.mxu0 0.0
        %630 = vmatpush1.msra.mxu0 0.0
        %631 = vmatprep.subr.mxu0 0.0
        %632 = vmatpush1.msra.mxu0 0.0
        %633 = vmatprep.subr.mxu0 0.0
        %634 = vmatpush1.msra.mxu0 0.0
        %635 = vmatprep.subr.mxu0 0.0
        %636 = vmatpush1.msra.mxu0 0.0
        %637 = vmatprep.subr.mxu0 0.0
        %638 = vmatpush1.msra.mxu0 0.0
        %639 = vmatprep.subr.mxu0 0.0
        %640 = vmatpush1.msra.mxu0 0.0
        %641 = vmatprep.subr.mxu0 0.0
        %642 = vmatpush1.msra.mxu0 0.0
        %643 = vmatprep.subr.mxu0 0.0
        %644 = vmatpush1.msra.mxu0 0.0
        %645 = vmatprep.subr.mxu0 0.0
        %646 = vmatpush1.msra.mxu0 0.0
        %647 = vmatprep.subr.mxu0 0.0
        %648 = vmatpush1.msra.mxu0 0.0
        %649 = vmatprep.subr.mxu0 0.0
        %650 = vmatpush1.msra.mxu0 0.0
        %651 = vmatprep.subr.mxu0 0.0
        %652 = vmatpush1.msra.mxu0 0.0
        %653 = vmatprep.subr.mxu0 0.0
        %654 = vmatpush1.msra.mxu0 0.0
        %655 = vmatprep.subr.mxu0 0.0
        %656 = vmatpush1.msra.mxu0 0.0
        %657 = vmatprep.subr.mxu0 0.0
        %658 = vmatpush1.msra.mxu0 0.0
        %659 = vmatprep.subr.mxu0 0.0
        %660 = vmatpush1.msra.mxu0 0.0
        %661 = vmatprep.mubr.f32.mxu0 0.0
        %662 = vmatmul.mubr.f32.gmra.mrb[0].mxu0 %v590
        %v663 = vpop.f32.mrb[0].mxu0
        %v664 = vadd.f32 %v584, %v663
        %v665 = vpop.f32.mrb[0].mxu0
        %v666 = vadd.f32 %v584, %v665
        %667 = vdwg.mxu0
        %v668 = vsub.f32 0.0, %v664
        %v669 = vsub.f32 0.0, %v666
        %v670 = vmul.f32 %v668, 1.442695
        %v671 = vpow.pop %v670
        %v672 = vmul.f32 %v669, 1.442695
        %v673 = vpow.pop %v672
        %v674 = vadd.f32 %v671, 1.0
        %v675 = vadd.f32 %v673, 1.0
        %v676 = vrcp.pop %v674
        %v677 = vrcp.pop %v675
        %v678 = vmin.f32 %v676, 1.0
        %v679 = vmin.f32 %v677, 1.0
        %v682 = vcombine.low %v678, %v679
        %684 = vst [vmem:[%s353] sm:$0xff] %v682
      $region64: #{mask_branchout.3} parent=47 // pred_fallthru
        _
      %p685 = scmp.lt.s32.totalorder %s22, 2
      %s686 = ssub.s32 %s22, 2
      %s687 = scalar_select %p685, 0, %s686
      %s688 = scalar_select %p685, 0, %s23
      %s689 = smul.u32 2, %s688
      %p690 = scmp.lt.s32.totalorder %s687, 1
      %s691 = scalar_select %p690, %s687, 1
      %p692 = scmp.lt.s32.totalorder %s689, 1
      %s693 = scalar_select %p692, %s689, 1
      %s694 = smul.addr %s691, 2
      %s695 = sadd.s32 %s693, %s694
      %s696 = smul.addr %s695, 4
      %s697 = scalar_lea.vmem %s7, %s696
      // Predicated region
      $region65: #{mask_branchout.3} parent=47 // pred_check
        %p698 = pneg %p218
      $region66: #{mask_branchout.3} parent=47 // pred_check_branch
        %700 = sbr.rel (%p698) target = $region68
      $region67: #{mask_branchout.3} parent=47 // pred_region
        %p701 = scmp.lt.s32.totalorder %s22, 2
        %s702 = ssub.s32 %s22, 2
        %s703 = scalar_select %p701, 0, %s702
        %s704 = scalar_select %p701, 0, %s23
        %s705 = smul.u32 2, %s704
      $region68: #{mask_branchout.3} parent=47 // pred_fallthru
        _
    $region48: #{mask_branchout.3} parent=5 // pred_fallthru
      _
    %p706 = scmp.le.s32.totalorder 2, %s13
    // Predicated region
    $region69: #{mask_branchout.3} parent=5 // pred_check
      %p707 = pneg %p706
    $region70: #{mask_branchout.3} parent=5 // pred_check_branch
      %709 = sbr.rel (%p707) target = $region72
    $region71: #{mask_branchout.3} parent=5 // pred_region
      %s710 = ssub.s32 %s13, 2
      // Predicated region
      $region73: #{mask_branchout.3} parent=71 // pred_check
        %p711 = pneg %p224
      $region74: #{mask_branchout.3} parent=71 // pred_check_branch
        %713 = sbr.rel (%p711) target = $region76
      $region75: #{mask_branchout.3} parent=71 // pred_region
        %p714 = scmp.lt.s32.totalorder %s24, 2
        %s715 = ssub.s32 %s24, 2
        %s716 = scalar_select %p714, 0, %s715
        %s717 = scalar_select %p714, 0, %s25
        %s718 = smul.u32 2, %s717
        %p719 = scmp.lt.s32.totalorder %s716, 1
        %s720 = scalar_select %p719, %s716, 1
        %p721 = scmp.lt.s32.totalorder %s718, 1
        %s722 = scalar_select %p721, %s718, 1
        %s723 = smul.addr %s720, 2
        %s724 = sadd.s32 %s722, %s723
        %s725 = smul.addr %s724, 4
        %s726 = scalar_lea.vmem %s7, %s725
      $region76: #{mask_branchout.3} parent=71 // pred_fallthru
        _
    $region72: #{mask_branchout.3} parent=5 // pred_fallthru
      _
  $region6: #{mask_branchout.3} parent=0 // loop_footer
    %s17 = sadd.s32 1, %s13
  $region7: #{mask_branchout.3} parent=0 // loop_footer_branch
    %12 = sbr.rel target = $region3
  $region8: #{mask_branchout.3} parent=0 // loop_exit
    _

</llo_original>
